<compile_context>
chip_gen: v6e
topology: v6e:2x2x1
jax: 0.10.0
libtpu: 0.0.40
codegen_flags: <defaults>
</compile_context>

<pallas_src>
import functools

import jax
import jax.numpy as jnp
from jax.experimental import pallas as pl
from jax.experimental.pallas import tpu as pltpu

_LANE = 128


def _round_up(x, m):
    return ((x + m - 1) // m) * m


def _gate_pitch(hidden):
    """Column pitch at which each gate's block starts in the packed weights."""
    if hidden < _LANE or hidden % _LANE == 0:
        return hidden                       # contiguous gates (small / aligned H)
    return _round_up(hidden, _LANE)         # per-gate 128-lane pitch for odd big H


def _gru_scan_kernel(xz_ref, wxz_ref, wh_ref, bgi_ref, bhn_ref, h0_ref,
                     o_ref, h_scr, *, hidden, gate_pitch):
    """Fused T-step GRU recurrence; everything resident in VMEM.

    xz_ref  : (1, B, 2D)  per-step input block (x_enc | z_enc concatenated)
    wxz_ref : (2D, C)     input-to-hidden weights, gates packed at `gate_pitch`
    wh_ref  : (H,  C)     hidden-to-hidden weights
    bgi_ref : (1,  C)     folded bias: [b_ir+b_hr | b_iz+b_hz | b_in]
    bhn_ref : (1,  H)     b_hn (applied inside r * (h_n + b_hn))
    h0_ref  : (B,  H)     initial hidden state
    o_ref   : (B,  H)     final hidden state (aliases h0's HBM buffer)
    h_scr   : (B,  H) f32 VMEM carry, persists across grid steps
    """
    t = pl.program_id(0)
    T = pl.num_programs(0)
    H, P = hidden, gate_pitch

    @pl.when(t == 0)
    def _():
        h_scr[...] = h0_ref[...].astype(jnp.float32)

    h = h_scr[...]                              # f32 carry
    wdt = wxz_ref.dtype                         # bf16 (or f32) weights

    # Two adjacent MXU dots (f32 accumulation); gi bias already folded.
    gi = jnp.dot(xz_ref[0].astype(wdt), wxz_ref[...],
                 preferred_element_type=jnp.float32) + bgi_ref[...]
    gh = jnp.dot(h.astype(wdt), wh_ref[...],
                 preferred_element_type=jnp.float32)

    # Static sub-vreg gate slices (lane offsets 0 / P / 2P).
    i_r, i_z, i_n = gi[:, 0:H], gi[:, P:P + H], gi[:, 2 * P:2 * P + H]
    h_r, h_z, h_n = gh[:, 0:H], gh[:, P:P + H], gh[:, 2 * P:2 * P + H]

    r = jax.nn.sigmoid(i_r + h_r)
    zg = jax.nn.sigmoid(i_z + h_z)
    n = jnp.tanh(i_n + r * (h_n + bhn_ref[...]))

    h_next = (1.0 - zg) * n + zg * h
    h_scr[...] = h_next

    @pl.when(t == T - 1)
    def _():
        o_ref[...] = h_next.astype(o_ref.dtype)


def pack_gru_params(w_ih, w_hh, b_ih, b_hh, weight_dtype=jnp.bfloat16):
    """One-time conversion of PyTorch nn.GRU params to the kernel layout.

    PyTorch shapes: w_ih (3H, 2D), w_hh (3H, H), b_ih (3H,), b_hh (3H,);
    gate order r|z|n.  Returns (w_xz, w_h, b_gi, b_hn, gate_pitch) with gates
    packed at `gate_pitch` columns and total columns padded to a 128 multiple.
    Weights in `weight_dtype`, biases in f32.
    """
    three_h, _ = w_ih.shape
    H = three_h // 3
    P = _gate_pitch(H)
    C = _round_up(3 * P, _LANE)

    def pack_cols(mat_t, out_dtype):            # (rows, 3H) -> (rows, C)
        out = jnp.zeros((mat_t.shape[0], C), out_dtype)
        for g in range(3):
            out = out.at[:, g * P:g * P + H].set(
                mat_t[:, g * H:(g + 1) * H].astype(out_dtype))
        return out

    w_xz = pack_cols(w_ih.T, weight_dtype)      # (2D, C) merged x|z weights
    w_h = pack_cols(w_hh.T, weight_dtype)       # (H,  C)

    # Folded gi bias: r,z gates get b_ih + b_hh; n gate keeps only b_in.
    b_fold = jnp.concatenate([b_ih[:2 * H] + b_hh[:2 * H], b_ih[2 * H:]])
    b_gi = pack_cols(b_fold.reshape(1, -1), jnp.float32)       # (1, C)
    b_hn = b_hh[2 * H:].reshape(1, H).astype(jnp.float32)      # (1, H)
    return w_xz, w_h, b_gi, b_hn, P


def gru_scan(xz_seq, h0, packed_params):
    """Run T fused GRU steps.  xz_seq: (T, B, 2D), h0: (B, H) -> final (B, H)."""
    w_xz, w_h, b_gi, b_hn, gate_pitch = packed_params
    T, B, in_dim = xz_seq.shape
    H = h0.shape[-1]
    C = w_xz.shape[1]

    kernel = functools.partial(_gru_scan_kernel, hidden=H, gate_pitch=gate_pitch)

    # VMEM budget: resident weights/biases + double-buffered per-step input
    # + h0/out blocks + f32 carry scratch (+ headroom).  Kept well under the
    # v7x 64 MiB physical budget; raise explicitly for large H on v5e/v6e.
    itemsize = jnp.dtype(w_xz.dtype).itemsize
    resident = (w_xz.size + w_h.size) * itemsize + (b_gi.size + b_hn.size) * 4
    per_step = 2 * B * in_dim * jnp.dtype(xz_seq.dtype).itemsize
    carry = 3 * B * H * 4
    vmem_limit = int(min(96 * 2**20, max(16 * 2**20, 2 * (resident + per_step + carry))))

    cost = pl.CostEstimate(
        flops=2 * T * B * (in_dim + H) * 3 * H,
        transcendentals=T * B * 3 * H,
        bytes_accessed=int(xz_seq.nbytes + w_xz.nbytes + w_h.nbytes
                           + b_gi.nbytes + b_hn.nbytes + 2 * h0.nbytes),
    )

    grid_spec = pltpu.PrefetchScalarGridSpec(
        num_scalar_prefetch=0,
        grid=(T,),
        in_specs=[
            pl.BlockSpec((1, B, in_dim), lambda t: (t, 0, 0)),   # per-step input
            pl.BlockSpec(w_xz.shape, lambda t: (0, 0)),          # resident weights
            pl.BlockSpec(w_h.shape, lambda t: (0, 0)),
            pl.BlockSpec(b_gi.shape, lambda t: (0, 0)),
            pl.BlockSpec(b_hn.shape, lambda t: (0, 0)),
            pl.BlockSpec((B, H), lambda t: (0, 0)),              # h0
        ],
        out_specs=pl.BlockSpec((B, H), lambda t: (0, 0)),
        scratch_shapes=[pltpu.VMEM((B, H), jnp.float32)],        # h carry
    )

    return pl.pallas_call(
        kernel,
        out_shape=jax.ShapeDtypeStruct((B, H), h0.dtype),
        grid_spec=grid_spec,
        input_output_aliases={5: 0},   # h_next overwrites h0's buffer in place
        compiler_params=pltpu.CompilerParams(
            dimension_semantics=("arbitrary",),                  # recurrence axis
            vmem_limit_bytes=vmem_limit),
        cost_estimate=cost,
    )(xz_seq, w_xz, w_h, b_gi, b_hn, h0)


def gru_state_forward(x_enc, z_enc, h, packed_params):
    """JAX wrapper matching GRUState.forward. Returns (h_next, None)."""
    xz = jnp.concatenate([x_enc, z_enc], axis=-1)[None]   # (1, B, 2D): T == 1
    h_next = gru_scan(xz, h, packed_params)
    return h_next, None


def init_gru_params(key, latent_dim):
    """Deterministic init mirroring nn.GRU(latent_dim*2, latent_dim) shapes."""
    H = latent_dim
    in_dim = 2 * latent_dim
    k = 1.0 / jnp.sqrt(jnp.float32(H))
    k1, k2, k3, k4 = jax.random.split(key, 4)
    w_ih = jax.random.uniform(k1, (3 * H, in_dim), jnp.float32, -k, k)
    w_hh = jax.random.uniform(k2, (3 * H, H), jnp.float32, -k, k)
    b_ih = jax.random.uniform(k3, (3 * H,), jnp.float32, -k, k)
    b_hh = jax.random.uniform(k4, (3 * H,), jnp.float32, -k, k)
    return w_ih, w_hh, b_ih, b_hh


def _gru_scan_reference(xz_seq, h0, w_ih, w_hh, b_ih, b_hh):
    """Pure-JAX f32 reference of the PyTorch GRU over T steps."""
    H = h0.shape[-1]

    def step(h, xz):
        gi = xz @ w_ih.T + b_ih
        gh = h @ w_hh.T + b_hh
        i_r, i_z, i_n = gi[:, :H], gi[:, H:2 * H], gi[:, 2 * H:]
        h_r, h_z, h_n = gh[:, :H], gh[:, H:2 * H], gh[:, 2 * H:]
        r = jax.nn.sigmoid(i_r + h_r)
        z = jax.nn.sigmoid(i_z + h_z)
        n = jnp.tanh(i_n + r * h_n)        # h_n already contains b_hn -> r*(Wh+b_hn)
        return (1.0 - z) * n + z * h, None

    h_final, _ = jax.lax.scan(step, h0, xz_seq)
    return h_final


if __name__ == "__main__":
    latent_dim = 32
    batch = 8

    key = jax.random.PRNGKey(0)
    kp, kx, kz, kh, ks = jax.random.split(key, 5)

    raw_params = init_gru_params(kp, latent_dim)

    x_enc = jax.random.normal(kx, (batch, latent_dim), jnp.float32)
    z_enc = jax.random.normal(kz, (batch, latent_dim), jnp.float32)
    h = jax.random.normal(kh, (batch, latent_dim), jnp.float32)

    T = 6
    xz_seq = jax.random.normal(ks, (T, batch, 2 * latent_dim), jnp.float32)

    # References (pure JAX, f32) computed up front.
    h_ref_step = _gru_scan_reference(
        jnp.concatenate([x_enc, z_enc], axis=-1)[None], h, *raw_params)
    h_ref_scan = _gru_scan_reference(xz_seq, h, *raw_params)
    jax.block_until_ready((h_ref_step, h_ref_scan))

    # --- Test 1: module forward (single GRU step), bf16 weights ------------
    packed_bf16 = pack_gru_params(*raw_params, weight_dtype=jnp.bfloat16)
    h_next, aux = gru_state_forward(x_enc, z_enc, h, packed_bf16)
    jax.block_until_ready(h_next)
    assert h_next.shape == (batch, latent_dim)
    assert h_next.dtype == h.dtype
    assert aux is None
    err1 = float(jnp.max(jnp.abs(h_next - h_ref_step)))
    assert err1 < 5e-2, f"single-step mismatch vs reference: {err1}"

    # --- Test 2: fused T-step recurrence, f32 weights (tight tolerance) ----
    packed_f32 = pack_gru_params(*raw_params, weight_dtype=jnp.float32)
    h_final = gru_scan(xz_seq, h, packed_f32)
    jax.block_until_ready(h_final)
    assert h_final.shape == (batch, latent_dim)
    err2 = float(jnp.max(jnp.abs(h_final - h_ref_scan)))
    assert err2 < 1e-3, f"scan mismatch vs reference: {err2}"

    print("KERNEL_OK")
</pallas_src>

<mosaic_0001>
module attributes {stable_mosaic.version = 11 : i64} {
  func.func @_gru_scan_kernel(%arg0: i32, %arg1: memref<1x8x64xf32, #tpu.memory_space<vmem>>, %arg2: memref<64x128xbf16, #tpu.memory_space<vmem>>, %arg3: memref<32x128xbf16, #tpu.memory_space<vmem>>, %arg4: memref<1x128xf32, #tpu.memory_space<vmem>>, %arg5: memref<1x32xf32, #tpu.memory_space<vmem>>, %arg6: memref<8x32xf32, #tpu.memory_space<vmem>>, %arg7: memref<8x32xf32, #tpu.memory_space<vmem>>, %arg8: memref<8x32xf32, #tpu.memory_space<vmem>>) attributes {dimension_semantics = [#tpu.dimension_semantics<arbitrary>], iteration_bounds = array<i64: 1>, scalar_prefetch = 0 : i64, scratch_operands = 1 : i64, tpu.core_type = #tpu.core_type<tc>, window_params = [{transform_indices = @transform_0, window_bounds = array<i64: 1, 8, 64>}, {pipeline_mode = #tpu.pipeline_mode<synchronous>, transform_indices = @transform_1, window_bounds = array<i64: 64, 128>}, {pipeline_mode = #tpu.pipeline_mode<synchronous>, transform_indices = @transform_2, window_bounds = array<i64: 32, 128>}, {pipeline_mode = #tpu.pipeline_mode<synchronous>, transform_indices = @transform_3, window_bounds = array<i64: 1, 128>}, {pipeline_mode = #tpu.pipeline_mode<synchronous>, transform_indices = @transform_4, window_bounds = array<i64: 1, 32>}, {pipeline_mode = #tpu.pipeline_mode<synchronous>, transform_indices = @transform_5, window_bounds = array<i64: 8, 32>}, {pipeline_mode = #tpu.pipeline_mode<synchronous>, transform_indices = @transform_6, window_bounds = array<i64: 8, 32>}]} {
    %c0_i32 = arith.constant 0 : i32
    %0 = arith.cmpi eq, %arg0, %c0_i32 : i32
    %1 = arith.extui %0 : i1 to i32
    %c0_i32_0 = arith.constant 0 : i32
    %2 = arith.cmpi ne, %1, %c0_i32_0 : i32
    scf.if %2 {
      %c0_21 = arith.constant 0 : index
      %c0_22 = arith.constant 0 : index
      %48 = vector.load %arg6[%c0_21, %c0_22] : memref<8x32xf32, #tpu.memory_space<vmem>>, vector<8x32xf32>
      %c0_23 = arith.constant 0 : index
      %c0_24 = arith.constant 0 : index
      %49 = vector.load %arg8[%c0_23, %c0_24] : memref<8x32xf32, #tpu.memory_space<vmem>>, vector<8x32xf32>
      tpu.vector_store %arg8[%c0_23, %c0_24], %48 {strides = array<i32>} : memref<8x32xf32, #tpu.memory_space<vmem>>, vector<8x32xf32>,
    } else {
    }
    %c0 = arith.constant 0 : index
    %c0_1 = arith.constant 0 : index
    %3 = vector.load %arg8[%c0, %c0_1] : memref<8x32xf32, #tpu.memory_space<vmem>>, vector<8x32xf32>
    %c0_2 = arith.constant 0 : index
    %c0_3 = arith.constant 0 : index
    %c0_4 = arith.constant 0 : index
    %4 = vector.load %arg1[%c0_2, %c0_3, %c0_4] : memref<1x8x64xf32, #tpu.memory_space<vmem>>, vector<1x8x64xf32>
    %5 = vector.shape_cast %4 : vector<1x8x64xf32> to vector<8x64xf32>
    %6 = arith.truncf %5 : vector<8x64xf32> to vector<8x64xbf16>
    %c0_5 = arith.constant 0 : index
    %c0_6 = arith.constant 0 : index
    %7 = vector.load %arg2[%c0_5, %c0_6] : memref<64x128xbf16, #tpu.memory_space<vmem>>, vector<64x128xbf16>
    %cst = arith.constant dense<0.000000e+00> : vector<8x128xf32>
    %8 = tpu.matmul %6, %7, %cst {dimension_numbers = #tpu.dot_dimension_numbers<[1], [0], [0], [1], [0, 0, 1, 1], [], []>} : vector<8x64xbf16>, vector<64x128xbf16>, vector<8x128xf32> -> vector<8x128xf32>
    %c0_7 = arith.constant 0 : index
    %c0_8 = arith.constant 0 : index
    %9 = vector.load %arg4[%c0_7, %c0_8] : memref<1x128xf32, #tpu.memory_space<vmem>>, vector<1x128xf32>
    %10 = vector.broadcast %9 : vector<1x128xf32> to vector<8x128xf32>
    %11 = arith.addf %8, %10 : vector<8x128xf32>
    %12 = arith.truncf %3 : vector<8x32xf32> to vector<8x32xbf16>
    %c0_9 = arith.constant 0 : index
    %c0_10 = arith.constant 0 : index
    %13 = vector.load %arg3[%c0_9, %c0_10] : memref<32x128xbf16, #tpu.memory_space<vmem>>, vector<32x128xbf16>
    %cst_11 = arith.constant dense<0.000000e+00> : vector<8x128xf32>
    %14 = tpu.matmul %12, %13, %cst_11 {dimension_numbers = #tpu.dot_dimension_numbers<[1], [0], [0], [1], [0, 0, 1, 1], [], []>} : vector<8x32xbf16>, vector<32x128xbf16>, vector<8x128xf32> -> vector<8x128xf32>
    %15 = vector.extract_strided_slice %11 {offsets = [0, 0], sizes = [8, 32], strides = [1, 1]} : vector<8x128xf32> to vector<8x32xf32>
    %16 = vector.extract_strided_slice %11 {offsets = [0, 32], sizes = [8, 32], strides = [1, 1]} : vector<8x128xf32> to vector<8x32xf32>
    %17 = vector.extract_strided_slice %11 {offsets = [0, 64], sizes = [8, 32], strides = [1, 1]} : vector<8x128xf32> to vector<8x32xf32>
    %18 = vector.extract_strided_slice %14 {offsets = [0, 0], sizes = [8, 32], strides = [1, 1]} : vector<8x128xf32> to vector<8x32xf32>
    %19 = vector.extract_strided_slice %14 {offsets = [0, 32], sizes = [8, 32], strides = [1, 1]} : vector<8x128xf32> to vector<8x32xf32>
    %20 = vector.extract_strided_slice %14 {offsets = [0, 64], sizes = [8, 32], strides = [1, 1]} : vector<8x128xf32> to vector<8x32xf32>
    %21 = arith.addf %15, %18 : vector<8x32xf32>
    %22 = arith.negf %21 : vector<8x32xf32>
    %23 = math.exp %22 : vector<8x32xf32>
    %cst_12 = arith.constant 1.000000e+00 : f32
    %24 = vector.broadcast %cst_12 : f32 to vector<8x32xf32>
    %25 = arith.addf %24, %23 : vector<8x32xf32>
    %26 = arith.divf %24, %25 : vector<8x32xf32>
    %27 = arith.addf %16, %19 : vector<8x32xf32>
    %28 = arith.negf %27 : vector<8x32xf32>
    %29 = math.exp %28 : vector<8x32xf32>
    %cst_13 = arith.constant 1.000000e+00 : f32
    %30 = vector.broadcast %cst_13 : f32 to vector<8x32xf32>
    %31 = arith.addf %30, %29 : vector<8x32xf32>
    %32 = arith.divf %30, %31 : vector<8x32xf32>
    %c0_14 = arith.constant 0 : index
    %c0_15 = arith.constant 0 : index
    %33 = vector.load %arg5[%c0_14, %c0_15] : memref<1x32xf32, #tpu.memory_space<vmem>>, vector<1x32xf32>
    %34 = vector.broadcast %33 : vector<1x32xf32> to vector<8x32xf32>
    %35 = arith.addf %20, %34 : vector<8x32xf32>
    %36 = arith.mulf %26, %35 : vector<8x32xf32>
    %37 = arith.addf %17, %36 : vector<8x32xf32>
    %38 = math.tanh %37 : vector<8x32xf32>
    %cst_16 = arith.constant 1.000000e+00 : f32
    %39 = vector.broadcast %cst_16 : f32 to vector<8x32xf32>
    %40 = arith.subf %39, %32 : vector<8x32xf32>
    %41 = arith.mulf %40, %38 : vector<8x32xf32>
    %42 = arith.mulf %32, %3 : vector<8x32xf32>
    %43 = arith.addf %41, %42 : vector<8x32xf32>
    %c0_17 = arith.constant 0 : index
    %c0_18 = arith.constant 0 : index
    %44 = vector.load %arg8[%c0_17, %c0_18] : memref<8x32xf32, #tpu.memory_space<vmem>>, vector<8x32xf32>
    tpu.vector_store %arg8[%c0_17, %c0_18], %43 {strides = array<i32>} : memref<8x32xf32, #tpu.memory_space<vmem>>, vector<8x32xf32>,
    %c0_i32_19 = arith.constant 0 : i32
    %45 = arith.cmpi eq, %arg0, %c0_i32_19 : i32
    %46 = arith.extui %45 : i1 to i32
    %c0_i32_20 = arith.constant 0 : i32
    %47 = arith.cmpi ne, %46, %c0_i32_20 : i32
    scf.if %47 {
      %c0_21 = arith.constant 0 : index
      %c0_22 = arith.constant 0 : index
      %48 = vector.load %arg7[%c0_21, %c0_22] : memref<8x32xf32, #tpu.memory_space<vmem>>, vector<8x32xf32>
      tpu.vector_store %arg7[%c0_21, %c0_22], %43 {strides = array<i32>} : memref<8x32xf32, #tpu.memory_space<vmem>>, vector<8x32xf32>,
    } else {
    }
    return
  }
  func.func @transform_0(%arg0: i32) -> (i32, i32, i32) {
    %c0_i32 = arith.constant 0 : i32
    %c0_i32_0 = arith.constant 0 : i32
    %c0_i32_1 = arith.constant 0 : i32
    return %arg0, %c0_i32, %c0_i32_0 : i32, i32, i32
  }
  func.func @transform_1(%arg0: i32) -> (i32, i32) {
    %c0_i32 = arith.constant 0 : i32
    %c0_i32_0 = arith.constant 0 : i32
    %c0_i32_1 = arith.constant 0 : i32
    return %c0_i32, %c0_i32_0 : i32, i32
  }
  func.func @transform_2(%arg0: i32) -> (i32, i32) {
    %c0_i32 = arith.constant 0 : i32
    %c0_i32_0 = arith.constant 0 : i32
    %c0_i32_1 = arith.constant 0 : i32
    return %c0_i32, %c0_i32_0 : i32, i32
  }
  func.func @transform_3(%arg0: i32) -> (i32, i32) {
    %c0_i32 = arith.constant 0 : i32
    %c0_i32_0 = arith.constant 0 : i32
    %c0_i32_1 = arith.constant 0 : i32
    return %c0_i32, %c0_i32_0 : i32, i32
  }
  func.func @transform_4(%arg0: i32) -> (i32, i32) {
    %c0_i32 = arith.constant 0 : i32
    %c0_i32_0 = arith.constant 0 : i32
    %c0_i32_1 = arith.constant 0 : i32
    return %c0_i32, %c0_i32_0 : i32, i32
  }
  func.func @transform_5(%arg0: i32) -> (i32, i32) {
    %c0_i32 = arith.constant 0 : i32
    %c0_i32_0 = arith.constant 0 : i32
    %c0_i32_1 = arith.constant 0 : i32
    return %c0_i32, %c0_i32_0 : i32, i32
  }
  func.func @transform_6(%arg0: i32) -> (i32, i32) {
    %c0_i32 = arith.constant 0 : i32
    %c0_i32_0 = arith.constant 0 : i32
    %c0_i32_1 = arith.constant 0 : i32
    return %c0_i32, %c0_i32_0 : i32, i32
  }
}

</mosaic_0001>

<llo_original>
// kernel: tpu_custom_call.1
$region0: #{tpu_custom_call.1}
  #allocation0 [shape = 'u32[]', space=smem, size = 0x4, offset = 0x4, fixed_abs, tag = 'smem constant byte address 0x4 - core index']
  #allocation1 [shape = 'u32[144,128]{1,0:T(1,128)}', space=vmem, size = 0x12000, scoped, tag = 'internal scratch']
  #allocation2 [shape = 'f32[8,32]{1,0:T(8,128)}', space=vmem, size = 0x1000, scoped, tag = 'scratch operand']
  %s0 = inlined_call_operand.vmem [shape: f32[1,8,64], index: 0, kind: input, shape index: {}]
  %s1 = inlined_call_operand.hbm [shape: bf16[64,128], index: 1, kind: input, shape index: {}]
  %s2 = inlined_call_operand.vmem [shape: bf16[32,128], index: 2, kind: input, shape index: {}]
  %s3 = inlined_call_operand.vmem [shape: f32[1,128], index: 3, kind: input, shape index: {}]
  %s4 = inlined_call_operand.hbm [shape: f32[1,32], index: 4, kind: input, shape index: {}]
  %s5 = inlined_call_operand.hbm [shape: f32[8,32], index: 5, kind: input, shape index: {}, may-alias: {5,6}]
  %s6 = inlined_call_operand.hbm [shape: f32[8,32], index: 6, kind: output, shape index: {}, may-alias: {5,6}]
  %s7 = sld [smem:[#allocation0]]
  $region54: #{tpu_custom_call.1} parent=0
    _
  %s9 = ssub.s32 1, %s7
  %s10 = scalar_select 0, %s9, %s7
  $region1: #{tpu_custom_call.1} parent=0
    #allocation3 [shape = 'u8[16384]{0}', space=vmem, size = 0x4000, scoped, tag = 'input window, operand 1, single buffered']
    #allocation4 [shape = 's32[1]{0}', space=sflag, size = 0x4, scoped, tag = 'scoped memory for tpu_custom_call.1']
    #allocation5 [shape = 's32[1]{0}', space=sflag, size = 0x4, scoped, tag = 'scoped memory for tpu_custom_call.1']
    #allocation6 [shape = 'u8[512]{0}', space=vmem, size = 0x400, scoped, tag = 'input window, operand 4, single buffered']
    #allocation7 [shape = 's32[1]{0}', space=sflag, size = 0x4, scoped, tag = 'scoped memory for tpu_custom_call.1']
    #allocation8 [shape = 'u8[4096]{0}', space=vmem, size = 0x1000, scoped, tag = 'input window, operand 5, single buffered']
    #allocation9 [shape = 'u8[4096]{0}', space=vmem, size = 0x1000, scoped, tag = 'output window, operand 0, single buffered']
    %11 = vsyncpa [#allocation4], 0
    %12 = vsyncpa [#allocation7], 0
    %13 = vsyncpa [#allocation5], 0
    // Predicated region
    $region2: #{tpu_custom_call.1} parent=1 // pred_check
      _
    $region3: #{tpu_custom_call.1} parent=1 // pred_check_branch
      %15 = sbr.rel (0) target = $region5
    $region4: #{tpu_custom_call.1} parent=1 // pred_region
      _
    $region5: #{tpu_custom_call.1} parent=1 // pred_fallthru
      _
    // Predicated region
    $region6: #{tpu_custom_call.1} parent=1 // pred_check
      _
    $region7: #{tpu_custom_call.1} parent=1 // pred_check_branch
      %17 = sbr.rel (0) target = $region9
    $region8: #{tpu_custom_call.1} parent=1 // pred_region
      %s19 = ssub.s32 512, 512
      %20 = vsyncadd [#allocation4], %s19
      %s21 = sshll.u32 [#allocation3], 4
      %s22 = int_to_ptr.vmem [resolvable:$true] %s21
      %27 = dma.hbm_to_vmem [thread:$0]  %s1, 512, %s22, [#allocation4], 64, 64, 4
    $region9: #{tpu_custom_call.1} parent=1 // pred_fallthru
      _
    // Predicated region
    $region10: #{tpu_custom_call.1} parent=1 // pred_check
      _
    $region11: #{tpu_custom_call.1} parent=1 // pred_check_branch
      %29 = sbr.rel (0) target = $region13
    $region12: #{tpu_custom_call.1} parent=1 // pred_region
      _
    $region13: #{tpu_custom_call.1} parent=1 // pred_fallthru
      _
    // Predicated region
    $region14: #{tpu_custom_call.1} parent=1 // pred_check
      _
    $region15: #{tpu_custom_call.1} parent=1 // pred_check_branch
      %31 = sbr.rel (0) target = $region17
    $region16: #{tpu_custom_call.1} parent=1 // pred_region
      _
    $region17: #{tpu_custom_call.1} parent=1 // pred_fallthru
      _
    // Predicated region
    $region18: #{tpu_custom_call.1} parent=1 // pred_check
      _
    $region19: #{tpu_custom_call.1} parent=1 // pred_check_branch
      %33 = sbr.rel (0) target = $region21
    $region20: #{tpu_custom_call.1} parent=1 // pred_region
      %s35 = ssub.s32 16, 16
      %36 = vsyncadd [#allocation7], %s35
      %s38 = sshll.u32 [#allocation6], 4
      %s39 = int_to_ptr.vmem [resolvable:$true] %s38
      %41 = dma.hbm_to_vmem [thread:$0]  %s4, 16, %s39, [#allocation7]
    $region21: #{tpu_custom_call.1} parent=1 // pred_fallthru
      _
    // Predicated region
    $region22: #{tpu_custom_call.1} parent=1 // pred_check
      _
    $region23: #{tpu_custom_call.1} parent=1 // pred_check_branch
      %43 = sbr.rel (0) target = $region25
    $region24: #{tpu_custom_call.1} parent=1 // pred_region
      %s45 = ssub.s32 128, 128
      %46 = vsyncadd [#allocation7], %s45
      %s48 = sshll.u32 [#allocation8], 4
      %s49 = int_to_ptr.vmem [resolvable:$true] %s48
      %51 = dma.hbm_to_vmem [thread:$0]  %s5, 128, %s49, [#allocation7]
    $region25: #{tpu_custom_call.1} parent=1 // pred_fallthru
      _
    // Predicated region
    $region26: #{tpu_custom_call.1} parent=1 // pred_check
      _
    $region27: #{tpu_custom_call.1} parent=1 // pred_check_branch
      %53 = sbr.rel (0) target = $region29
    $region28: #{tpu_custom_call.1} parent=1 // pred_region
      %54 = dma.done [#allocation4], 512
    $region29: #{tpu_custom_call.1} parent=1 // pred_fallthru
      _
    // Predicated region
    $region30: #{tpu_custom_call.1} parent=1 // pred_check
      _
    $region31: #{tpu_custom_call.1} parent=1 // pred_check_branch
      %56 = sbr.rel (0) target = $region33
    $region32: #{tpu_custom_call.1} parent=1 // pred_region
      %57 = dma.done [#allocation7], 16
    $region33: #{tpu_custom_call.1} parent=1 // pred_fallthru
      _
    // Predicated region
    $region34: #{tpu_custom_call.1} parent=1 // pred_check
      _
    $region35: #{tpu_custom_call.1} parent=1 // pred_check_branch
      %59 = sbr.rel (0) target = $region37
    $region36: #{tpu_custom_call.1} parent=1 // pred_region
      %60 = dma.done [#allocation7], 128
    $region37: #{tpu_custom_call.1} parent=1 // pred_fallthru
      _
    %p62 = scmp.eq.s32.totalorder 0, 0
    // Predicated region
    $region38: #{tpu_custom_call.1} parent=1 // pred_check
      %p63 = pneg %p62
    $region39: #{tpu_custom_call.1} parent=1 // pred_check_branch
      %65 = sbr.rel (%p63) target = $region41
    $region40: #{tpu_custom_call.1} parent=1 // pred_region
      %v66 = vld [vmem:[#allocation8] sm:$0xff]
      %vm67 = vcmask 261120
      %68 = vst.msk [vmem:[#allocation2] sm:$0xff] %vm67, %v66
    $region41: #{tpu_custom_call.1} parent=1 // pred_fallthru
      _
    %v69 = vld [vmem:[#allocation2] sm:$0xff]
    %v70 = vld [vmem:[%s0] sm:$0xff]
    %v71 = vpack.c.bf16 %v70, %v70
    %v72 = vld [vmem:[#allocation3] sm:$0xf]
    %v73 = vld [vmem:[#allocation3 + $0x4] sm:$0xf]
    %v74 = vld [vmem:[#allocation3 + $0x8] sm:$0xf]
    %v75 = vld [vmem:[#allocation3 + $0xc] sm:$0xf]
    %v76 = vld [vmem:[#allocation3 + $0x10] sm:$0xf]
    %v77 = vld [vmem:[#allocation3 + $0x14] sm:$0xf]
    %v78 = vld [vmem:[#allocation3 + $0x18] sm:$0xf]
    %v79 = vld [vmem:[#allocation3 + $0x1c] sm:$0xf]
    %v80 = vld [vmem:[%s3] sm:$0x1]
    %v82 = vlaneseq
    %v83 = vshrl.u32 %v82, 7
    %v84 = vsub.s32 0, %v83
    %v85 = vrot.slane %v80, %v84
    %v95 = vunpack.c.l.b16 %v72
    %v96 = vunpack.c.l.b16 %v73
    %v97 = vunpack.c.l.b16 %v74
    %v98 = vunpack.c.l.b16 %v75
    %v99 = vunpack.c.l.b16 %v76
    %v100 = vunpack.c.l.b16 %v77
    %v101 = vunpack.c.l.b16 %v78
    %v102 = vunpack.c.l.b16 %v79
    %v103 = vpack.c.b16 %v96, %v95
    %v104 = vpack.c.b16 %v98, %v97
    %v105 = vpack.c.b16 %v100, %v99
    %v106 = vpack.c.b16 %v102, %v101
    %vm111 = vcmask 523264
    %v113 = vsel %vm111, %v71, 0
    %115 = vmatprep.subr.bf16.mxu0 0
    %116 = vmatpush1.bf16.msra.mxu0 0
    %117 = vmatprep.subr.bf16.mxu0 0
    %118 = vmatpush1.bf16.msra.mxu0 0
    %119 = vmatprep.subr.bf16.mxu0 0
    %120 = vmatpush1.bf16.msra.mxu0 0
    %121 = vmatprep.subr.bf16.mxu0 0
    %122 = vmatpush1.bf16.msra.mxu0 0
    %123 = vmatprep.subr.bf16.mxu0 0
    %124 = vmatpush1.bf16.msra.mxu0 %v106
    %125 = vmatprep.subr.bf16.mxu0 0
    %126 = vmatpush1.bf16.msra.mxu0 %v105
    %127 = vmatprep.subr.bf16.mxu0 0
    %128 = vmatpush1.bf16.msra.mxu0 %v104
    %129 = vmatprep.subr.bf16.mxu0 0
    %130 = vmatpush1.bf16.msra.mxu0 %v103
    %131 = vmatprep.subr.bf16.mxu0 0
    %132 = vmatpush2.bf16.msra.mxu0 0
    %133 = vmatprep.subr.bf16.mxu0 0
    %134 = vmatpush2.bf16.msra.mxu0 0
    %135 = vmatprep.subr.bf16.mxu0 0
    %136 = vmatpush2.bf16.msra.mxu0 0
    %137 = vmatprep.subr.bf16.mxu0 0
    %138 = vmatpush2.bf16.msra.mxu0 0
    %139 = vmatprep.subr.bf16.mxu0 0
    %140 = vmatpush2.bf16.msra.mxu0 0
    %141 = vmatprep.subr.bf16.mxu0 0
    %142 = vmatpush2.bf16.msra.mxu0 0
    %143 = vmatprep.subr.bf16.mxu0 0
    %144 = vmatpush2.bf16.msra.mxu0 0
    %145 = vmatprep.subr.bf16.mxu0 0
    %146 = vmatpush2.bf16.msra.mxu0 0
    %147 = vmatprep.mubr.bf16.mxu0 0
    %148 = vmatmul.mubr.bf16.gmra.mxu0 %v113
    %v149 = vpop.f32.mrf.mxu0
    %v150 = vadd.f32 %v85, %v149
    %v151 = vpop.f32.mrf.mxu0
    %v152 = vpop.f32.mrf.mxu0
    %v153 = vpop.f32.mrf.mxu0
    %154 = vdwg.mxu0
    %v155 = vpack.c.bf16 %v69, %v69
    %v156 = vld [vmem:[%s2] sm:$0xf]
    %v157 = vld [vmem:[%s2 + $0x4] sm:$0xf]
    %v158 = vld [vmem:[%s2 + $0x8] sm:$0xf]
    %v159 = vld [vmem:[%s2 + $0xc] sm:$0xf]
    %v164 = vunpack.c.l.b16 %v156
    %v165 = vunpack.c.l.b16 %v157
    %v166 = vunpack.c.l.b16 %v158
    %v167 = vunpack.c.l.b16 %v159
    %v168 = vpack.c.b16 %v165, %v164
    %v169 = vpack.c.b16 %v167, %v166
    %vm172 = vcmask 261120
    %v174 = vsel %vm172, %v155, 0
    %176 = vmatprep.subr.bf16.mxu0 0
    %177 = vmatpush1.bf16.msra.mxu0 0
    %178 = vmatprep.subr.bf16.mxu0 0
    %179 = vmatpush1.bf16.msra.mxu0 0
    %180 = vmatprep.subr.bf16.mxu0 0
    %181 = vmatpush1.bf16.msra.mxu0 0
    %182 = vmatprep.subr.bf16.mxu0 0
    %183 = vmatpush1.bf16.msra.mxu0 0
    %184 = vmatprep.subr.bf16.mxu0 0
    %185 = vmatpush1.bf16.msra.mxu0 0
    %186 = vmatprep.subr.bf16.mxu0 0
    %187 = vmatpush1.bf16.msra.mxu0 0
    %188 = vmatprep.subr.bf16.mxu0 0
    %189 = vmatpush1.bf16.msra.mxu0 %v169
    %190 = vmatprep.subr.bf16.mxu0 0
    %191 = vmatpush1.bf16.msra.mxu0 %v168
    %192 = vmatprep.subr.bf16.mxu0 0
    %193 = vmatpush2.bf16.msra.mxu0 0
    %194 = vmatprep.subr.bf16.mxu0 0
    %195 = vmatpush2.bf16.msra.mxu0 0
    %196 = vmatprep.subr.bf16.mxu0 0
    %197 = vmatpush2.bf16.msra.mxu0 0
    %198 = vmatprep.subr.bf16.mxu0 0
    %199 = vmatpush2.bf16.msra.mxu0 0
    %200 = vmatprep.subr.bf16.mxu0 0
    %201 = vmatpush2.bf16.msra.mxu0 0
    %202 = vmatprep.subr.bf16.mxu0 0
    %203 = vmatpush2.bf16.msra.mxu0 0
    %204 = vmatprep.subr.bf16.mxu0 0
    %205 = vmatpush2.bf16.msra.mxu0 0
    %206 = vmatprep.subr.bf16.mxu0 0
    %207 = vmatpush2.bf16.msra.mxu0 0
    %208 = vmatprep.mubr.bf16.mxu0 0
    %209 = vmatmul.mubr.bf16.gmra.mxu0 %v174
    %v210 = vpop.f32.mrf.mxu0
    %v211 = vadd.f32 0.0, %v210
    %v212 = vpop.f32.mrf.mxu0
    %v213 = vpop.f32.mrf.mxu0
    %v214 = vpop.f32.mrf.mxu0
    %215 = vdwg.mxu0
    %v216 = vadd.f32 %v150, %v211
    %v217 = vxor.u32 %v216, 2147483648
    %v218 = vmul.f32 %v217, 1.442695
    %v219 = vpow.pop %v218
    %v220 = vadd.f32 %v219, 1.0
    %v221 = vrcp.pop %v220
    %v222 = vmul.f32 1.0, %v221
    %v223 = vld [vmem:[#allocation6] sm:$0x1]
    %v225 = vlaneseq
    %v226 = vshrl.u32 %v225, 7
    %v227 = vsub.s32 0, %v226
    %v228 = vrot.slane %v223, %v227
    %229 = vrot.lane.b32.xlu0 %v228, 64
    %v230 = vpop.permute.xlu0 %229
    %v232 = vadd.f32 %v211, %v230
    %234 = vrot.lane.b32.xlu0 %v232, 64
    %v235 = vpop.permute.xlu0 %234
    %v237 = vmul.f32 %v222, %v235
    %239 = vrot.lane.b32.xlu0 %v237, 64
    %v240 = vpop.permute.xlu0 %239
    %v242 = vadd.f32 %v150, %v240
    %v243 = vtanh.pop %v242
    %v244 = vsub.f32 1.0, %v222
    %246 = vrot.lane.b32.xlu0 %v243, 96
    %v247 = vpop.permute.xlu0 %246
    %v249 = vmul.f32 %v244, %v247
    %251 = vrot.lane.b32.xlu0 %v69, 32
    %v252 = vpop.permute.xlu0 %251
    %v254 = vmul.f32 %v222, %v252
    %v255 = vadd.f32 %v249, %v254
    %257 = vrot.lane.b32.xlu0 %v255, 96
    %v258 = vpop.permute.xlu0 %257
    %260 = vst.msk [vmem:[#allocation2] sm:$0xff] %vm172, %v258
    // Predicated region
    $region42: #{tpu_custom_call.1} parent=1 // pred_check
      %p261 = pneg %p62
    $region43: #{tpu_custom_call.1} parent=1 // pred_check_branch
      %263 = sbr.rel (%p261) target = $region45
    $region44: #{tpu_custom_call.1} parent=1 // pred_region
      %264 = vst.msk [vmem:[#allocation9] sm:$0xff] %vm172, %v258
    $region45: #{tpu_custom_call.1} parent=1 // pred_fallthru
      _
    // Predicated region
    $region46: #{tpu_custom_call.1} parent=1 // pred_check
      _
    $region47: #{tpu_custom_call.1} parent=1 // pred_check_branch
      %266 = sbr.rel (0) target = $region49
    $region48: #{tpu_custom_call.1} parent=1 // pred_region
      %s268 = ssub.s32 128, 128
      %269 = vsyncadd [#allocation5], %s268
      %s271 = sshll.u32 [#allocation9], 4
      %s272 = int_to_ptr.vmem [resolvable:$true] %s271
      %274 = dma.vmem_to_hbm [thread:$0]  %s272, 128, %s6, [#allocation5]
    $region49: #{tpu_custom_call.1} parent=1 // pred_fallthru
      _
    // Predicated region
    $region50: #{tpu_custom_call.1} parent=1 // pred_check
      _
    $region51: #{tpu_custom_call.1} parent=1 // pred_check_branch
      %276 = sbr.rel (0) target = $region53
    $region52: #{tpu_custom_call.1} parent=1 // pred_region
      %277 = dma.done [#allocation5], 128
    $region53: #{tpu_custom_call.1} parent=1 // pred_fallthru
      _
    %278 = vsyncpa [#allocation4], 1
    %279 = vsyncpa [#allocation7], 1
    %280 = vsyncpa [#allocation5], 1

</llo_original>
